<compile_context>
chip_gen: v7x
topology: tpu7x:2x2x1
jax: 0.10.0
libtpu: 0.0.40
codegen_flags: <defaults>
</compile_context>

<pallas_src>
import functools

import jax
import jax.numpy as jnp
from jax.experimental import pallas as pl
from jax.experimental.pallas import tpu as pltpu


LN_EPS = 1e-5          # nn.LayerNorm default eps
OUT_LANES = 128        # lane-dense output width (unmasked vst)


def _masked_layernorm(x, gamma, beta, width, mask):
    """LayerNorm over the first `width` lanes of x (B, Dpad); pad lanes of x are 0."""
    mean = jnp.sum(x, axis=-1, keepdims=True) * (1.0 / width)
    diff = (x - mean) * mask                       # zero-out pad lanes
    var = jnp.sum(diff * diff, axis=-1, keepdims=True) * (1.0 / width)
    inv = jax.lax.rsqrt(var + LN_EPS)
    return diff * inv * gamma + beta               # gamma/beta pad = 0 -> pad lanes stay 0


def _disc_kernel(x_ref, w_ref, v_ref, out_ref, *, label, input_dim, hidden_dim, batch):
    Dpad = w_ref.shape[-1]
    H, H2, Hh = hidden_dim, 2 * hidden_dim, hidden_dim // 2
    B = batch

    x = x_ref[...]                                 # (B, input_dim) f32
    v = v_ref[...]                                 # (11, Dpad) packed vectors

    # static row views of the packed vector slab (each zero-padded to Dpad lanes)
    b1, b2 = v[0:1, :], v[1:2, :]
    ba, ga, bea = v[2:3, :], v[3:4, :], v[4:5, :]
    bb, gb, beb = v[5:6, :], v[6:7, :], v[7:8, :]
    b3, w4_row = v[8:9, :], v[9:10, :]
    # b4 is stored replicated across all lanes of row 10 -> recover via lane reduce
    b4 = jnp.max(v[10:11, :], axis=-1, keepdims=True)            # (1, 1)

    lane = jax.lax.broadcasted_iota(jnp.int32, (1, Dpad), 1)
    mask_hh = (lane < Hh).astype(jnp.float32)
    mask_h = (lane < H).astype(jnp.float32)

    # ---- first_layer: Linear -> ReLU -> Linear ----
    w1 = w_ref[0][:input_dim, :]                    # sublane-aligned static slice
    h = jnp.dot(x, w1, preferred_element_type=jnp.float32) + b1
    h = jnp.maximum(h, 0.0)
    h = jnp.dot(h, w_ref[1], preferred_element_type=jnp.float32) + b2

    # ---- ResidualBlock: x + LN(Linear(LN(ReLU(Linear(x))))) ----
    t = jnp.dot(h, w_ref[2], preferred_element_type=jnp.float32) + ba
    t = jnp.maximum(t, 0.0)
    t = _masked_layernorm(t, ga, bea, Hh, mask_hh)
    t = jnp.dot(t, w_ref[3], preferred_element_type=jnp.float32) + bb
    t = _masked_layernorm(t, gb, beb, H, mask_h)
    h = h + t

    # ---- final_layer: Linear -> ReLU -> (H2 -> 1) projection on VPU/XLU ----
    f = jnp.dot(h, w_ref[4], preferred_element_type=jnp.float32) + b3
    f = jnp.maximum(f, 0.0)
    preds = jnp.sum(f * w4_row, axis=-1, keepdims=True) + b4      # (B, 1) logits

    # ---- BCE-with-logits, mean reduction; label is a compile-time constant ----
    per = jnp.maximum(preds, 0.0) + jnp.log1p(jnp.exp(-jnp.abs(preds)))
    if label:                                       # y == 1 -> subtract z*y term
        per = per - preds
    loss = jnp.mean(per).reshape(1, 1)

    # ---- lane-dense combined output: rows :B = preds, rows B:B+8 = loss ----
    out_ref[0:B, :] = jnp.broadcast_to(preds, (B, OUT_LANES))
    out_ref[B:B + 8, :] = jnp.broadcast_to(loss, (8, OUT_LANES))


def pack_params(params, input_dim, hidden_dim):
    """Pack the 16 raw tensors into (weight_slab, vector_slab) for the kernel."""
    (w1, b1, w2, b2, wa, ba, ga, bea, wb, bb, gb, beb, w3, b3, w4, b4) = params
    H, H2, Hh = hidden_dim, 2 * hidden_dim, hidden_dim // 2
    Dpad = max(8, ((max(input_dim, H2) + 7) // 8) * 8)

    def pad_w(w):
        d_in, d_out = w.shape
        return jnp.zeros((Dpad, Dpad), jnp.float32).at[:d_in, :d_out].set(w)

    w_slab = jnp.stack([pad_w(w1), pad_w(w2), pad_w(wa), pad_w(wb), pad_w(w3)])

    def pad_v(vec):
        vec = jnp.asarray(vec, jnp.float32).reshape(-1)
        return jnp.zeros((Dpad,), jnp.float32).at[: vec.shape[0]].set(vec)

    v_slab = jnp.stack([
        pad_v(b1), pad_v(b2),
        pad_v(ba), pad_v(ga), pad_v(bea),
        pad_v(bb), pad_v(gb), pad_v(beb),
        pad_v(b3), pad_v(w4.reshape(-1)),
        jnp.full((Dpad,), b4.reshape(-1)[0], jnp.float32),   # b4 replicated across lanes
    ])                                                        # (11, Dpad)

    return w_slab, v_slab, (input_dim, hidden_dim)


def yuchen_discriminator_forward(x, label, packed):
    """Mirrors YuchenDiscriminator.forward(x, label) -> (loss, preds)."""
    w_slab, v_slab, (input_dim, hidden_dim) = packed
    B = x.shape[0]
    H, H2, Hh = hidden_dim, 2 * hidden_dim, hidden_dim // 2

    kernel = functools.partial(
        _disc_kernel, label=bool(label),
        input_dim=input_dim, hidden_dim=hidden_dim, batch=B)

    flops = int(2 * B * (input_dim * H2 + H2 * H + H * Hh + Hh * H + H * H2 + H2))
    bytes_accessed = int(4 * (x.size + w_slab.size + v_slab.size + (B + 8) * OUT_LANES))
    cost = pl.CostEstimate(flops=flops, transcendentals=4 * B,
                           bytes_accessed=bytes_accessed)

    vmem = pl.BlockSpec(memory_space=pltpu.MemorySpace.VMEM)
    out = pl.pallas_call(
        kernel,
        out_shape=jax.ShapeDtypeStruct((B + 8, OUT_LANES), jnp.float32),
        in_specs=[vmem, vmem, vmem],
        out_specs=vmem,
        cost_estimate=cost,
    )(x.astype(jnp.float32), w_slab, v_slab)

    preds = out[:B, 0:1]      # (B, 1) logits
    loss = out[B, 0]          # scalar
    return loss, preds


def make_params(key, input_dim, hidden_dim):
    """Deterministic synthetic parameters (shapes match the PyTorch module)."""
    H, H2, Hh = hidden_dim, hidden_dim * 2, hidden_dim // 2
    ks = jax.random.split(key, 10)

    def lin(k, d_in, d_out):
        kw, kb = jax.random.split(k)
        w = jax.random.normal(kw, (d_in, d_out), jnp.float32) * 0.05
        b = jax.random.normal(kb, (d_out,), jnp.float32) * 0.05
        return w, b

    w1, b1 = lin(ks[0], input_dim, H2)                         # first_layer.0
    w2, b2 = lin(ks[1], H2, H)                                 # first_layer.2
    wa, ba = lin(ks[2], H, Hh)                                 # block.0
    ga = 1.0 + jax.random.normal(ks[6], (Hh,), jnp.float32) * 0.05   # block.2 LN weight
    bea = jax.random.normal(ks[7], (Hh,), jnp.float32) * 0.05        # block.2 LN bias
    wb, bb = lin(ks[3], Hh, H)                                 # block.3
    gb = 1.0 + jax.random.normal(ks[8], (H,), jnp.float32) * 0.05    # block.4 LN weight
    beb = jax.random.normal(ks[9], (H,), jnp.float32) * 0.05         # block.4 LN bias
    w3, b3 = lin(ks[4], H, H2)                                 # final_layer.0
    w4, b4 = lin(ks[5], H2, 1)                                 # final_layer.2
    return (w1, b1, w2, b2, wa, ba, ga, bea, wb, bb, gb, beb, w3, b3, w4, b4)


def reference_forward(x, label, params):
    """Pure-JAX reference (same math, unpacked params) for a numerical sanity check."""
    (w1, b1, w2, b2, wa, ba, ga, bea, wb, bb, gb, beb, w3, b3, w4, b4) = params

    def ln(t, g, b):
        mean = jnp.mean(t, -1, keepdims=True)
        var = jnp.mean((t - mean) ** 2, -1, keepdims=True)
        return (t - mean) * jax.lax.rsqrt(var + LN_EPS) * g + b

    h = jnp.maximum(x @ w1 + b1, 0.0) @ w2 + b2
    t = jnp.maximum(h @ wa + ba, 0.0)
    t = ln(t, ga, bea)
    t = ln(t @ wb + bb, gb, beb)
    h = h + t
    preds = jnp.maximum(h @ w3 + b3, 0.0) @ w4 + b4
    y = jnp.ones_like(preds) if label else jnp.zeros_like(preds)
    loss = jnp.mean(jnp.maximum(preds, 0.0) - preds * y
                    + jnp.log1p(jnp.exp(-jnp.abs(preds))))
    return loss, preds


if __name__ == "__main__":
    key = jax.random.PRNGKey(0)
    k_x, k_p = jax.random.split(key)

    batch, input_dim, hidden_dim = 8, 32, 32
    x = jax.random.normal(k_x, (batch, input_dim), jnp.float32)
    params = make_params(k_p, input_dim, hidden_dim)
    packed = pack_params(params, input_dim, hidden_dim)

    # forward(x, label=True) -> (loss, preds)
    loss, preds = yuchen_discriminator_forward(x, True, packed)
    jax.block_until_ready((loss, preds))

    ref_loss, ref_preds = reference_forward(x, True, params)
    assert jnp.allclose(preds, ref_preds, rtol=1e-4, atol=1e-5)
    assert jnp.allclose(loss, ref_loss, rtol=1e-4, atol=1e-5)

    # also exercise the label=False (fake) path
    loss_f, preds_f = yuchen_discriminator_forward(x, False, packed)
    jax.block_until_ready((loss_f, preds_f))
    ref_loss_f, ref_preds_f = reference_forward(x, False, params)
    assert jnp.allclose(preds_f, ref_preds_f, rtol=1e-4, atol=1e-5)
    assert jnp.allclose(loss_f, ref_loss_f, rtol=1e-4, atol=1e-5)

    print("KERNEL_OK")
</pallas_src>

<mosaic_0001>
module attributes {stable_mosaic.version = 11 : i64} {
  func.func @_disc_kernel(%arg0: memref<8x32xf32, #tpu.memory_space<vmem>>, %arg1: memref<5x64x64xf32, #tpu.memory_space<vmem>>, %arg2: memref<11x64xf32, #tpu.memory_space<vmem>>, %arg3: memref<16x128xf32, #tpu.memory_space<vmem>>) attributes {dimension_semantics = [], scalar_prefetch = 0 : i64, scratch_operands = 0 : i64, tpu.core_type = #tpu.core_type<tc>} {
    %c0 = arith.constant 0 : index
    %c0_0 = arith.constant 0 : index
    %0 = vector.load %arg0[%c0, %c0_0] : memref<8x32xf32, #tpu.memory_space<vmem>>, vector<8x32xf32>
    %c0_1 = arith.constant 0 : index
    %c0_2 = arith.constant 0 : index
    %1 = vector.load %arg2[%c0_1, %c0_2] : memref<11x64xf32, #tpu.memory_space<vmem>>, vector<11x64xf32>
    %2 = vector.extract_strided_slice %1 {offsets = [0, 0], sizes = [1, 64], strides = [1, 1]} : vector<11x64xf32> to vector<1x64xf32>
    %3 = vector.extract_strided_slice %1 {offsets = [1, 0], sizes = [1, 64], strides = [1, 1]} : vector<11x64xf32> to vector<1x64xf32>
    %4 = vector.extract_strided_slice %1 {offsets = [2, 0], sizes = [1, 64], strides = [1, 1]} : vector<11x64xf32> to vector<1x64xf32>
    %5 = vector.extract_strided_slice %1 {offsets = [3, 0], sizes = [1, 64], strides = [1, 1]} : vector<11x64xf32> to vector<1x64xf32>
    %6 = vector.extract_strided_slice %1 {offsets = [4, 0], sizes = [1, 64], strides = [1, 1]} : vector<11x64xf32> to vector<1x64xf32>
    %7 = vector.extract_strided_slice %1 {offsets = [5, 0], sizes = [1, 64], strides = [1, 1]} : vector<11x64xf32> to vector<1x64xf32>
    %8 = vector.extract_strided_slice %1 {offsets = [6, 0], sizes = [1, 64], strides = [1, 1]} : vector<11x64xf32> to vector<1x64xf32>
    %9 = vector.extract_strided_slice %1 {offsets = [7, 0], sizes = [1, 64], strides = [1, 1]} : vector<11x64xf32> to vector<1x64xf32>
    %10 = vector.extract_strided_slice %1 {offsets = [8, 0], sizes = [1, 64], strides = [1, 1]} : vector<11x64xf32> to vector<1x64xf32>
    %11 = vector.extract_strided_slice %1 {offsets = [9, 0], sizes = [1, 64], strides = [1, 1]} : vector<11x64xf32> to vector<1x64xf32>
    %12 = vector.extract_strided_slice %1 {offsets = [10, 0], sizes = [1, 64], strides = [1, 1]} : vector<11x64xf32> to vector<1x64xf32>
    %cst = arith.constant dense<0xFF800000> : vector<1xf32>
    %13 = vector.multi_reduction <maximumf>, %12, %cst [1] : vector<1x64xf32> to vector<1xf32>
    %14 = vector.shape_cast %13 : vector<1xf32> to vector<1x1xf32>
    %15 = tpu.iota {dimensions = array<i32: 1>} : vector<1x64xi32>
    %c16_i32 = arith.constant 16 : i32
    %16 = vector.broadcast %c16_i32 : i32 to vector<1x64xi32>
    %17 = arith.cmpi slt, %15, %16 : vector<1x64xi32>
    %18 = arith.extui %17 : vector<1x64xi1> to vector<1x64xi32>
    %19 = arith.sitofp %18 : vector<1x64xi32> to vector<1x64xf32>
    %c32_i32 = arith.constant 32 : i32
    %20 = vector.broadcast %c32_i32 : i32 to vector<1x64xi32>
    %21 = arith.cmpi slt, %15, %20 : vector<1x64xi32>
    %22 = arith.extui %21 : vector<1x64xi1> to vector<1x64xi32>
    %23 = arith.sitofp %22 : vector<1x64xi32> to vector<1x64xf32>
    %c0_3 = arith.constant 0 : index
    %c0_4 = arith.constant 0 : index
    %c0_5 = arith.constant 0 : index
    %24 = vector.load %arg1[%c0_3, %c0_4, %c0_5] : memref<5x64x64xf32, #tpu.memory_space<vmem>>, vector<1x64x64xf32>
    %25 = vector.shape_cast %24 : vector<1x64x64xf32> to vector<64x64xf32>
    %26 = vector.extract_strided_slice %25 {offsets = [0, 0], sizes = [32, 64], strides = [1, 1]} : vector<64x64xf32> to vector<32x64xf32>
    %cst_6 = arith.constant dense<0.000000e+00> : vector<8x64xf32>
    %27 = tpu.matmul %0, %26, %cst_6 {dimension_numbers = #tpu.dot_dimension_numbers<[1], [0], [0], [1], [0, 0, 1, 1], [], []>} : vector<8x32xf32>, vector<32x64xf32>, vector<8x64xf32> -> vector<8x64xf32>
    %28 = vector.broadcast %2 : vector<1x64xf32> to vector<8x64xf32>
    %29 = arith.addf %27, %28 : vector<8x64xf32>
    %cst_7 = arith.constant 0.000000e+00 : f32
    %30 = vector.broadcast %cst_7 : f32 to vector<8x64xf32>
    %31 = arith.maximumf %29, %30 : vector<8x64xf32>
    %c1 = arith.constant 1 : index
    %c0_8 = arith.constant 0 : index
    %c0_9 = arith.constant 0 : index
    %32 = vector.load %arg1[%c1, %c0_8, %c0_9] : memref<5x64x64xf32, #tpu.memory_space<vmem>>, vector<1x64x64xf32>
    %33 = vector.shape_cast %32 : vector<1x64x64xf32> to vector<64x64xf32>
    %cst_10 = arith.constant dense<0.000000e+00> : vector<8x64xf32>
    %34 = tpu.matmul %31, %33, %cst_10 {dimension_numbers = #tpu.dot_dimension_numbers<[1], [0], [0], [1], [0, 0, 1, 1], [], []>} : vector<8x64xf32>, vector<64x64xf32>, vector<8x64xf32> -> vector<8x64xf32>
    %35 = vector.broadcast %3 : vector<1x64xf32> to vector<8x64xf32>
    %36 = arith.addf %34, %35 : vector<8x64xf32>
    %c2 = arith.constant 2 : index
    %c0_11 = arith.constant 0 : index
    %c0_12 = arith.constant 0 : index
    %37 = vector.load %arg1[%c2, %c0_11, %c0_12] : memref<5x64x64xf32, #tpu.memory_space<vmem>>, vector<1x64x64xf32>
    %38 = vector.shape_cast %37 : vector<1x64x64xf32> to vector<64x64xf32>
    %cst_13 = arith.constant dense<0.000000e+00> : vector<8x64xf32>
    %39 = tpu.matmul %36, %38, %cst_13 {dimension_numbers = #tpu.dot_dimension_numbers<[1], [0], [0], [1], [0, 0, 1, 1], [], []>} : vector<8x64xf32>, vector<64x64xf32>, vector<8x64xf32> -> vector<8x64xf32>
    %40 = vector.broadcast %4 : vector<1x64xf32> to vector<8x64xf32>
    %41 = arith.addf %39, %40 : vector<8x64xf32>
    %cst_14 = arith.constant 0.000000e+00 : f32
    %42 = vector.broadcast %cst_14 : f32 to vector<8x64xf32>
    %43 = arith.maximumf %41, %42 : vector<8x64xf32>
    %cst_15 = arith.constant dense<0.000000e+00> : vector<8xf32>
    %44 = vector.multi_reduction <add>, %43, %cst_15 [1] : vector<8x64xf32> to vector<8xf32>
    %45 = vector.shape_cast %44 : vector<8xf32> to vector<8x1xf32>
    %cst_16 = arith.constant 6.250000e-02 : f32
    %46 = vector.broadcast %cst_16 : f32 to vector<8x1xf32>
    %47 = arith.mulf %45, %46 : vector<8x1xf32>
    %48 = vector.broadcast %47 : vector<8x1xf32> to vector<8x64xf32>
    %49 = arith.subf %43, %48 : vector<8x64xf32>
    %50 = vector.broadcast %19 : vector<1x64xf32> to vector<8x64xf32>
    %51 = arith.mulf %49, %50 : vector<8x64xf32>
    %52 = arith.mulf %51, %51 : vector<8x64xf32>
    %cst_17 = arith.constant dense<0.000000e+00> : vector<8xf32>
    %53 = vector.multi_reduction <add>, %52, %cst_17 [1] : vector<8x64xf32> to vector<8xf32>
    %54 = vector.shape_cast %53 : vector<8xf32> to vector<8x1xf32>
    %cst_18 = arith.constant 6.250000e-02 : f32
    %55 = vector.broadcast %cst_18 : f32 to vector<8x1xf32>
    %56 = arith.mulf %54, %55 : vector<8x1xf32>
    %cst_19 = arith.constant 9.99999974E-6 : f32
    %57 = vector.broadcast %cst_19 : f32 to vector<8x1xf32>
    %58 = arith.addf %56, %57 : vector<8x1xf32>
    %59 = math.rsqrt %58 : vector<8x1xf32>
    %60 = vector.broadcast %59 : vector<8x1xf32> to vector<8x64xf32>
    %61 = arith.mulf %51, %60 : vector<8x64xf32>
    %62 = vector.broadcast %5 : vector<1x64xf32> to vector<8x64xf32>
    %63 = arith.mulf %61, %62 : vector<8x64xf32>
    %64 = vector.broadcast %6 : vector<1x64xf32> to vector<8x64xf32>
    %65 = arith.addf %63, %64 : vector<8x64xf32>
    %c3 = arith.constant 3 : index
    %c0_20 = arith.constant 0 : index
    %c0_21 = arith.constant 0 : index
    %66 = vector.load %arg1[%c3, %c0_20, %c0_21] : memref<5x64x64xf32, #tpu.memory_space<vmem>>, vector<1x64x64xf32>
    %67 = vector.shape_cast %66 : vector<1x64x64xf32> to vector<64x64xf32>
    %cst_22 = arith.constant dense<0.000000e+00> : vector<8x64xf32>
    %68 = tpu.matmul %65, %67, %cst_22 {dimension_numbers = #tpu.dot_dimension_numbers<[1], [0], [0], [1], [0, 0, 1, 1], [], []>} : vector<8x64xf32>, vector<64x64xf32>, vector<8x64xf32> -> vector<8x64xf32>
    %69 = vector.broadcast %7 : vector<1x64xf32> to vector<8x64xf32>
    %70 = arith.addf %68, %69 : vector<8x64xf32>
    %cst_23 = arith.constant dense<0.000000e+00> : vector<8xf32>
    %71 = vector.multi_reduction <add>, %70, %cst_23 [1] : vector<8x64xf32> to vector<8xf32>
    %72 = vector.shape_cast %71 : vector<8xf32> to vector<8x1xf32>
    %cst_24 = arith.constant 3.125000e-02 : f32
    %73 = vector.broadcast %cst_24 : f32 to vector<8x1xf32>
    %74 = arith.mulf %72, %73 : vector<8x1xf32>
    %75 = vector.broadcast %74 : vector<8x1xf32> to vector<8x64xf32>
    %76 = arith.subf %70, %75 : vector<8x64xf32>
    %77 = vector.broadcast %23 : vector<1x64xf32> to vector<8x64xf32>
    %78 = arith.mulf %76, %77 : vector<8x64xf32>
    %79 = arith.mulf %78, %78 : vector<8x64xf32>
    %cst_25 = arith.constant dense<0.000000e+00> : vector<8xf32>
    %80 = vector.multi_reduction <add>, %79, %cst_25 [1] : vector<8x64xf32> to vector<8xf32>
    %81 = vector.shape_cast %80 : vector<8xf32> to vector<8x1xf32>
    %cst_26 = arith.constant 3.125000e-02 : f32
    %82 = vector.broadcast %cst_26 : f32 to vector<8x1xf32>
    %83 = arith.mulf %81, %82 : vector<8x1xf32>
    %cst_27 = arith.constant 9.99999974E-6 : f32
    %84 = vector.broadcast %cst_27 : f32 to vector<8x1xf32>
    %85 = arith.addf %83, %84 : vector<8x1xf32>
    %86 = math.rsqrt %85 : vector<8x1xf32>
    %87 = vector.broadcast %86 : vector<8x1xf32> to vector<8x64xf32>
    %88 = arith.mulf %78, %87 : vector<8x64xf32>
    %89 = vector.broadcast %8 : vector<1x64xf32> to vector<8x64xf32>
    %90 = arith.mulf %88, %89 : vector<8x64xf32>
    %91 = vector.broadcast %9 : vector<1x64xf32> to vector<8x64xf32>
    %92 = arith.addf %90, %91 : vector<8x64xf32>
    %93 = arith.addf %36, %92 : vector<8x64xf32>
    %c4 = arith.constant 4 : index
    %c0_28 = arith.constant 0 : index
    %c0_29 = arith.constant 0 : index
    %94 = vector.load %arg1[%c4, %c0_28, %c0_29] : memref<5x64x64xf32, #tpu.memory_space<vmem>>, vector<1x64x64xf32>
    %95 = vector.shape_cast %94 : vector<1x64x64xf32> to vector<64x64xf32>
    %cst_30 = arith.constant dense<0.000000e+00> : vector<8x64xf32>
    %96 = tpu.matmul %93, %95, %cst_30 {dimension_numbers = #tpu.dot_dimension_numbers<[1], [0], [0], [1], [0, 0, 1, 1], [], []>} : vector<8x64xf32>, vector<64x64xf32>, vector<8x64xf32> -> vector<8x64xf32>
    %97 = vector.broadcast %10 : vector<1x64xf32> to vector<8x64xf32>
    %98 = arith.addf %96, %97 : vector<8x64xf32>
    %cst_31 = arith.constant 0.000000e+00 : f32
    %99 = vector.broadcast %cst_31 : f32 to vector<8x64xf32>
    %100 = arith.maximumf %98, %99 : vector<8x64xf32>
    %101 = vector.broadcast %11 : vector<1x64xf32> to vector<8x64xf32>
    %102 = arith.mulf %100, %101 : vector<8x64xf32>
    %cst_32 = arith.constant dense<0.000000e+00> : vector<8xf32>
    %103 = vector.multi_reduction <add>, %102, %cst_32 [1] : vector<8x64xf32> to vector<8xf32>
    %104 = vector.shape_cast %103 : vector<8xf32> to vector<8x1xf32>
    %105 = vector.broadcast %14 : vector<1x1xf32> to vector<8x1xf32>
    %106 = arith.addf %104, %105 : vector<8x1xf32>
    %cst_33 = arith.constant 0.000000e+00 : f32
    %107 = vector.broadcast %cst_33 : f32 to vector<8x1xf32>
    %108 = arith.maximumf %106, %107 : vector<8x1xf32>
    %109 = math.absf %106 : vector<8x1xf32>
    %cst_34 = arith.constant 0.000000e+00 : f32
    %110 = vector.broadcast %cst_34 : f32 to vector<8x1xf32>
    %111 = arith.subf %110, %109 : vector<8x1xf32>
    %112 = math.exp %111 : vector<8x1xf32>
    %113 = math.log1p %112 : vector<8x1xf32>
    %114 = arith.addf %108, %113 : vector<8x1xf32>
    %115 = arith.subf %114, %106 : vector<8x1xf32>
    %116 = vector.shape_cast %115 : vector<8x1xf32> to vector<1x8x1xf32>
    %cst_35 = arith.constant dense<0.000000e+00> : vector<1xf32>
    %117 = vector.multi_reduction <add>, %116, %cst_35 [1, 2] : vector<1x8x1xf32> to vector<1xf32>
    %118 = vector.shape_cast %117 : vector<1xf32> to vector<1x1x1xf32>
    %119 = vector.extract %118[0, 0, 0] : f32 from vector<1x1x1xf32>
    %cst_36 = arith.constant 8.000000e+00 : f32
    %120 = arith.divf %119, %cst_36 : f32
    %121 = vector.broadcast %120 : f32 to vector<1x1xf32>
    %122 = vector.shape_cast %106 : vector<8x1xf32> to vector<8x1xf32>
    %123 = vector.broadcast %122 : vector<8x1xf32> to vector<8x128xf32>
    %c0_37 = arith.constant 0 : index
    %c0_38 = arith.constant 0 : index
    %124 = vector.load %arg3[%c0_37, %c0_38] : memref<16x128xf32, #tpu.memory_space<vmem>>, vector<8x128xf32>
    tpu.vector_store %arg3[%c0_37, %c0_38], %123 {strides = array<i32>} : memref<16x128xf32, #tpu.memory_space<vmem>>, vector<8x128xf32>,
    %125 = vector.shape_cast %121 : vector<1x1xf32> to vector<1x1xf32>
    %126 = vector.broadcast %125 : vector<1x1xf32> to vector<8x128xf32>
    %c8 = arith.constant 8 : index
    %c0_39 = arith.constant 0 : index
    %127 = vector.load %arg3[%c8, %c0_39] : memref<16x128xf32, #tpu.memory_space<vmem>>, vector<8x128xf32>
    tpu.vector_store %arg3[%c8, %c0_39], %126 {strides = array<i32>} : memref<16x128xf32, #tpu.memory_space<vmem>>, vector<8x128xf32>,
    return
  }
}

</mosaic_0001>

<llo_original>
// kernel: tpu_custom_call.1
$region0: #{tpu_custom_call.1}
  #allocation0 [shape = 'u32[]', space=smem, size = 0x4, offset = 0x4, fixed_abs, tag = 'smem constant byte address 0x4 - core index']
  #allocation1 [shape = 'u32[144,128]{1,0:T(1,128)}', space=vmem, size = 0x12000, scoped, tag = 'internal scratch']
  %s0 = inlined_call_operand.hbm [shape: f32[8,32], index: 0, kind: input, shape index: {}]
  %s1 = inlined_call_operand.hbm [shape: f32[5,64,64], index: 1, kind: input, shape index: {}]
  %s2 = inlined_call_operand.hbm [shape: f32[11,64], index: 2, kind: input, shape index: {}]
  %s3 = inlined_call_operand.hbm [shape: f32[16,128], index: 3, kind: output, shape index: {}]
  %s4 = sld [smem:[#allocation0]]
  $region34: #{tpu_custom_call.1} parent=0
    _
  %s6 = ssub.s32 1, %s4
  %s7 = scalar_select 0, %s6, %s4
  $region1: #{tpu_custom_call.1} parent=0
    #allocation2 [shape = 'u8[4096]{0}', space=vmem, size = 0x1000, scoped, tag = 'input window, operand 0, single buffered']
    #allocation3 [shape = 's32[1]{0}', space=sflag, size = 0x4, scoped, tag = 'scoped memory for tpu_custom_call.1']
    #allocation4 [shape = 's32[1]{0}', space=sflag, size = 0x4, scoped, tag = 'scoped memory for tpu_custom_call.1']
    #allocation5 [shape = 'u8[163840]{0}', space=vmem, size = 0x28000, scoped, tag = 'input window, operand 1, single buffered']
    #allocation6 [shape = 's32[1]{0}', space=sflag, size = 0x4, scoped, tag = 'scoped memory for tpu_custom_call.1']
    #allocation7 [shape = 'u8[8192]{0}', space=vmem, size = 0x2000, scoped, tag = 'input window, operand 2, single buffered']
    #allocation8 [shape = 'u8[8192]{0}', space=vmem, size = 0x2000, scoped, tag = 'output window, operand 0, single buffered']
    %8 = vsyncpa [#allocation3], 0
    %9 = vsyncpa [#allocation6], 0
    %10 = vsyncpa [#allocation4], 0
    // Predicated region
    $region2: #{tpu_custom_call.1} parent=1 // pred_check
      _
    $region3: #{tpu_custom_call.1} parent=1 // pred_check_branch
      %12 = sbr.rel (0) target = $region5
    $region4: #{tpu_custom_call.1} parent=1 // pred_region
      %s14 = ssub.s32 128, 128
      %15 = vsyncadd [#allocation3], %s14
      %s17 = sshll.u32 [#allocation2], 4
      %s18 = int_to_ptr.vmem [resolvable:$true] %s17
      %20 = dma.hbm_to_vmem [thread:$0]  %s0, 128, %s18, [#allocation3]
    $region5: #{tpu_custom_call.1} parent=1 // pred_fallthru
      _
    // Predicated region
    $region6: #{tpu_custom_call.1} parent=1 // pred_check
      _
    $region7: #{tpu_custom_call.1} parent=1 // pred_check_branch
      %22 = sbr.rel (0) target = $region9
    $region8: #{tpu_custom_call.1} parent=1 // pred_region
      %s24 = ssub.s32 5120, 5120
      %25 = vsyncadd [#allocation6], %s24
      %s26 = sshll.u32 [#allocation5], 4
      %s27 = int_to_ptr.vmem [resolvable:$true] %s26
      %32 = dma.hbm_to_vmem [thread:$0]  %s1, 5120, %s27, [#allocation6], 128, 128, 8
    $region9: #{tpu_custom_call.1} parent=1 // pred_fallthru
      _
    // Predicated region
    $region10: #{tpu_custom_call.1} parent=1 // pred_check
      _
    $region11: #{tpu_custom_call.1} parent=1 // pred_check_branch
      %34 = sbr.rel (0) target = $region13
    $region12: #{tpu_custom_call.1} parent=1 // pred_region
      %s36 = ssub.s32 256, 256
      %37 = vsyncadd [#allocation6], %s36
      %s38 = sshll.u32 [#allocation7], 4
      %s39 = int_to_ptr.vmem [resolvable:$true] %s38
      %44 = dma.hbm_to_vmem [thread:$0]  %s2, 256, %s39, [#allocation6], 128, 128, 8
    $region13: #{tpu_custom_call.1} parent=1 // pred_fallthru
      _
    // Predicated region
    $region14: #{tpu_custom_call.1} parent=1 // pred_check
      _
    $region15: #{tpu_custom_call.1} parent=1 // pred_check_branch
      %46 = sbr.rel (0) target = $region17
    $region16: #{tpu_custom_call.1} parent=1 // pred_region
      %47 = dma.done [#allocation3], 128
    $region17: #{tpu_custom_call.1} parent=1 // pred_fallthru
      _
    // Predicated region
    $region18: #{tpu_custom_call.1} parent=1 // pred_check
      _
    $region19: #{tpu_custom_call.1} parent=1 // pred_check_branch
      %49 = sbr.rel (0) target = $region21
    $region20: #{tpu_custom_call.1} parent=1 // pred_region
      %50 = dma.done [#allocation6], 5120
    $region21: #{tpu_custom_call.1} parent=1 // pred_fallthru
      _
    // Predicated region
    $region22: #{tpu_custom_call.1} parent=1 // pred_check
      _
    $region23: #{tpu_custom_call.1} parent=1 // pred_check_branch
      %52 = sbr.rel (0) target = $region25
    $region24: #{tpu_custom_call.1} parent=1 // pred_region
      %53 = dma.done [#allocation6], 256
    $region25: #{tpu_custom_call.1} parent=1 // pred_fallthru
      _
    %v54 = vld [vmem:[#allocation2] sm:$0xff]
    %v55 = vld [vmem:[#allocation7] sm:$0xff]
    %v56 = vld [vmem:[#allocation7 + $0x8] sm:$0x7]
    %vm57 = vcmask 518146
    %v58 = vsel %vm57, %v56, -inf
    %59 = vmax.xlane.f32.xlu0 %v58
    %v60 = vpop.xlane.xlu0 %59
    %v61 = vlaneseq
    %v62 = vand.u32 %v61, 127
    %vm63 = vcmp.lt.s32.totalorder %v62, 16
    %v64 = vsel %vm63, 1, 0
    %v65 = vcvt.s32.f32 %v64
    %vm66 = vcmp.lt.s32.totalorder %v62, 32
    %v67 = vsel %vm66, 1, 0
    %v68 = vcvt.s32.f32 %v67
    %v69 = vld [vmem:[#allocation5] sm:$0xff]
    %v70 = vld [vmem:[#allocation5 + $0x8] sm:$0xff]
    %v71 = vld [vmem:[#allocation5 + $0x10] sm:$0xff]
    %v72 = vld [vmem:[#allocation5 + $0x18] sm:$0xff]
    %v73 = vlaneseq
    %v74 = vshrl.u32 %v73, 7
    %v75 = vsub.s32 0, %v74
    %v76 = vrot.slane %v55, %v75
    %vm77 = vcmask 261120
    %v79 = vsel %vm77, %v54, 0
    %81 = vmatprep.subr.mxu0 0.0
    %82 = vmatpush1.msra.mxu0 %v69
    %83 = vmatprep.subr.mxu0 0.0
    %84 = vmatpush1.msra.mxu0 %v70
    %85 = vmatprep.subr.mxu0 0.0
    %86 = vmatpush1.msra.mxu0 %v71
    %87 = vmatprep.subr.mxu0 0.0
    %88 = vmatpush1.msra.mxu0 %v72
    %89 = vmatprep.subr.mxu0 0.0
    %90 = vmatpush1.msra.mxu0 0.0
    %91 = vmatprep.subr.mxu0 0.0
    %92 = vmatpush1.msra.mxu0 0.0
    %93 = vmatprep.subr.mxu0 0.0
    %94 = vmatpush1.msra.mxu0 0.0
    %95 = vmatprep.subr.mxu0 0.0
    %96 = vmatpush1.msra.mxu0 0.0
    %97 = vmatprep.subr.mxu0 0.0
    %98 = vmatpush1.msra.mxu0 0.0
    %99 = vmatprep.subr.mxu0 0.0
    %100 = vmatpush1.msra.mxu0 0.0
    %101 = vmatprep.subr.mxu0 0.0
    %102 = vmatpush1.msra.mxu0 0.0
    %103 = vmatprep.subr.mxu0 0.0
    %104 = vmatpush1.msra.mxu0 0.0
    %105 = vmatprep.subr.mxu0 0.0
    %106 = vmatpush1.msra.mxu0 0.0
    %107 = vmatprep.subr.mxu0 0.0
    %108 = vmatpush1.msra.mxu0 0.0
    %109 = vmatprep.subr.mxu0 0.0
    %110 = vmatpush1.msra.mxu0 0.0
    %111 = vmatprep.subr.mxu0 0.0
    %112 = vmatpush1.msra.mxu0 0.0
    %113 = vmatprep.subr.mxu0 0.0
    %114 = vmatpush1.msra.mxu0 0.0
    %115 = vmatprep.subr.mxu0 0.0
    %116 = vmatpush1.msra.mxu0 0.0
    %117 = vmatprep.subr.mxu0 0.0
    %118 = vmatpush1.msra.mxu0 0.0
    %119 = vmatprep.subr.mxu0 0.0
    %120 = vmatpush1.msra.mxu0 0.0
    %121 = vmatprep.subr.mxu0 0.0
    %122 = vmatpush1.msra.mxu0 0.0
    %123 = vmatprep.subr.mxu0 0.0
    %124 = vmatpush1.msra.mxu0 0.0
    %125 = vmatprep.subr.mxu0 0.0
    %126 = vmatpush1.msra.mxu0 0.0
    %127 = vmatprep.subr.mxu0 0.0
    %128 = vmatpush1.msra.mxu0 0.0
    %129 = vmatprep.subr.mxu0 0.0
    %130 = vmatpush1.msra.mxu0 0.0
    %131 = vmatprep.subr.mxu0 0.0
    %132 = vmatpush1.msra.mxu0 0.0
    %133 = vmatprep.subr.mxu0 0.0
    %134 = vmatpush1.msra.mxu0 0.0
    %135 = vmatprep.subr.mxu0 0.0
    %136 = vmatpush1.msra.mxu0 0.0
    %137 = vmatprep.subr.mxu0 0.0
    %138 = vmatpush1.msra.mxu0 0.0
    %139 = vmatprep.subr.mxu0 0.0
    %140 = vmatpush1.msra.mxu0 0.0
    %141 = vmatprep.subr.mxu0 0.0
    %142 = vmatpush1.msra.mxu0 0.0
    %143 = vmatprep.subr.mxu0 0.0
    %144 = vmatpush1.msra.mxu0 0.0
    %145 = vmatprep.mubr.f32.mxu0 0.0
    %146 = vmatmul.mubr.f32.gmra.mrb[0].mxu0 %v79
    %v147 = vpop.f32.mrb[0].mxu0
    %v148 = vadd.f32 %v76, %v147
    %v149 = vpop.f32.mrb[0].mxu0
    %150 = vdwg.mxu0
    %v151 = vmax.f32 %v148, 0.0
    %s152 = scalar_lea.vmem [#allocation5], 64
    %v153 = vld [vmem:[%s152] sm:$0xff]
    %v154 = vld [vmem:[%s152 + $0x8] sm:$0xff]
    %v155 = vld [vmem:[%s152 + $0x10] sm:$0xff]
    %v156 = vld [vmem:[%s152 + $0x18] sm:$0xff]
    %v157 = vld [vmem:[%s152 + $0x20] sm:$0xff]
    %v158 = vld [vmem:[%s152 + $0x28] sm:$0xff]
    %v159 = vld [vmem:[%s152 + $0x30] sm:$0xff]
    %v160 = vld [vmem:[%s152 + $0x38] sm:$0xff]
    %v161 = vlaneseq
    %v162 = vshrl.u32 %v161, 7
    %v163 = vsub.s32 1, %v162
    %v164 = vrot.slane %v55, %v163
    %vm165 = vcmask 523264
    %v167 = vsel %vm165, %v151, 0
    %169 = vmatprep.subr.mxu0 0.0
    %170 = vmatpush1.msra.mxu0 %v153
    %171 = vmatprep.subr.mxu0 0.0
    %172 = vmatpush1.msra.mxu0 %v154
    %173 = vmatprep.subr.mxu0 0.0
    %174 = vmatpush1.msra.mxu0 %v155
    %175 = vmatprep.subr.mxu0 0.0
    %176 = vmatpush1.msra.mxu0 %v156
    %177 = vmatprep.subr.mxu0 0.0
    %178 = vmatpush1.msra.mxu0 %v157
    %179 = vmatprep.subr.mxu0 0.0
    %180 = vmatpush1.msra.mxu0 %v158
    %181 = vmatprep.subr.mxu0 0.0
    %182 = vmatpush1.msra.mxu0 %v159
    %183 = vmatprep.subr.mxu0 0.0
    %184 = vmatpush1.msra.mxu0 %v160
    %185 = vmatprep.subr.mxu0 0.0
    %186 = vmatpush1.msra.mxu0 0.0
    %187 = vmatprep.subr.mxu0 0.0
    %188 = vmatpush1.msra.mxu0 0.0
    %189 = vmatprep.subr.mxu0 0.0
    %190 = vmatpush1.msra.mxu0 0.0
    %191 = vmatprep.subr.mxu0 0.0
    %192 = vmatpush1.msra.mxu0 0.0
    %193 = vmatprep.subr.mxu0 0.0
    %194 = vmatpush1.msra.mxu0 0.0
    %195 = vmatprep.subr.mxu0 0.0
    %196 = vmatpush1.msra.mxu0 0.0
    %197 = vmatprep.subr.mxu0 0.0
    %198 = vmatpush1.msra.mxu0 0.0
    %199 = vmatprep.subr.mxu0 0.0
    %200 = vmatpush1.msra.mxu0 0.0
    %201 = vmatprep.subr.mxu0 0.0
    %202 = vmatpush1.msra.mxu0 0.0
    %203 = vmatprep.subr.mxu0 0.0
    %204 = vmatpush1.msra.mxu0 0.0
    %205 = vmatprep.subr.mxu0 0.0
    %206 = vmatpush1.msra.mxu0 0.0
    %207 = vmatprep.subr.mxu0 0.0
    %208 = vmatpush1.msra.mxu0 0.0
    %209 = vmatprep.subr.mxu0 0.0
    %210 = vmatpush1.msra.mxu0 0.0
    %211 = vmatprep.subr.mxu0 0.0
    %212 = vmatpush1.msra.mxu0 0.0
    %213 = vmatprep.subr.mxu0 0.0
    %214 = vmatpush1.msra.mxu0 0.0
    %215 = vmatprep.subr.mxu0 0.0
    %216 = vmatpush1.msra.mxu0 0.0
    %217 = vmatprep.subr.mxu0 0.0
    %218 = vmatpush1.msra.mxu0 0.0
    %219 = vmatprep.subr.mxu0 0.0
    %220 = vmatpush1.msra.mxu0 0.0
    %221 = vmatprep.subr.mxu0 0.0
    %222 = vmatpush1.msra.mxu0 0.0
    %223 = vmatprep.subr.mxu0 0.0
    %224 = vmatpush1.msra.mxu0 0.0
    %225 = vmatprep.subr.mxu0 0.0
    %226 = vmatpush1.msra.mxu0 0.0
    %227 = vmatprep.subr.mxu0 0.0
    %228 = vmatpush1.msra.mxu0 0.0
    %229 = vmatprep.subr.mxu0 0.0
    %230 = vmatpush1.msra.mxu0 0.0
    %231 = vmatprep.subr.mxu0 0.0
    %232 = vmatpush1.msra.mxu0 0.0
    %233 = vmatprep.mubr.f32.mxu0 0.0
    %234 = vmatmul.mubr.f32.gmra.mrb[0].mxu0 %v167
    %v235 = vpop.f32.mrb[0].mxu0
    %v236 = vadd.f32 %v164, %v235
    %v237 = vpop.f32.mrb[0].mxu0
    %238 = vdwg.mxu0
    %s239 = scalar_lea.vmem [#allocation5], 128
    %v240 = vld [vmem:[%s239] sm:$0xff]
    %v241 = vld [vmem:[%s239 + $0x8] sm:$0xff]
    %v242 = vld [vmem:[%s239 + $0x10] sm:$0xff]
    %v243 = vld [vmem:[%s239 + $0x18] sm:$0xff]
    %v244 = vld [vmem:[%s239 + $0x20] sm:$0xff]
    %v245 = vld [vmem:[%s239 + $0x28] sm:$0xff]
    %v246 = vld [vmem:[%s239 + $0x30] sm:$0xff]
    %v247 = vld [vmem:[%s239 + $0x38] sm:$0xff]
    %v248 = vlaneseq
    %v249 = vshrl.u32 %v248, 7
    %v250 = vsub.s32 2, %v249
    %v251 = vrot.slane %v55, %v250
    %v253 = vsel %vm165, %v236, 0
    %255 = vmatprep.subr.mxu0 0.0
    %256 = vmatpush1.msra.mxu0 %v240
    %257 = vmatprep.subr.mxu0 0.0
    %258 = vmatpush1.msra.mxu0 %v241
    %259 = vmatprep.subr.mxu0 0.0
    %260 = vmatpush1.msra.mxu0 %v242
    %261 = vmatprep.subr.mxu0 0.0
    %262 = vmatpush1.msra.mxu0 %v243
    %263 = vmatprep.subr.mxu0 0.0
    %264 = vmatpush1.msra.mxu0 %v244
    %265 = vmatprep.subr.mxu0 0.0
    %266 = vmatpush1.msra.mxu0 %v245
    %267 = vmatprep.subr.mxu0 0.0
    %268 = vmatpush1.msra.mxu0 %v246
    %269 = vmatprep.subr.mxu0 0.0
    %270 = vmatpush1.msra.mxu0 %v247
    %271 = vmatprep.subr.mxu0 0.0
    %272 = vmatpush1.msra.mxu0 0.0
    %273 = vmatprep.subr.mxu0 0.0
    %274 = vmatpush1.msra.mxu0 0.0
    %275 = vmatprep.subr.mxu0 0.0
    %276 = vmatpush1.msra.mxu0 0.0
    %277 = vmatprep.subr.mxu0 0.0
    %278 = vmatpush1.msra.mxu0 0.0
    %279 = vmatprep.subr.mxu0 0.0
    %280 = vmatpush1.msra.mxu0 0.0
    %281 = vmatprep.subr.mxu0 0.0
    %282 = vmatpush1.msra.mxu0 0.0
    %283 = vmatprep.subr.mxu0 0.0
    %284 = vmatpush1.msra.mxu0 0.0
    %285 = vmatprep.subr.mxu0 0.0
    %286 = vmatpush1.msra.mxu0 0.0
    %287 = vmatprep.subr.mxu0 0.0
    %288 = vmatpush1.msra.mxu0 0.0
    %289 = vmatprep.subr.mxu0 0.0
    %290 = vmatpush1.msra.mxu0 0.0
    %291 = vmatprep.subr.mxu0 0.0
    %292 = vmatpush1.msra.mxu0 0.0
    %293 = vmatprep.subr.mxu0 0.0
    %294 = vmatpush1.msra.mxu0 0.0
    %295 = vmatprep.subr.mxu0 0.0
    %296 = vmatpush1.msra.mxu0 0.0
    %297 = vmatprep.subr.mxu0 0.0
    %298 = vmatpush1.msra.mxu0 0.0
    %299 = vmatprep.subr.mxu0 0.0
    %300 = vmatpush1.msra.mxu0 0.0
    %301 = vmatprep.subr.mxu0 0.0
    %302 = vmatpush1.msra.mxu0 0.0
    %303 = vmatprep.subr.mxu0 0.0
    %304 = vmatpush1.msra.mxu0 0.0
    %305 = vmatprep.subr.mxu0 0.0
    %306 = vmatpush1.msra.mxu0 0.0
    %307 = vmatprep.subr.mxu0 0.0
    %308 = vmatpush1.msra.mxu0 0.0
    %309 = vmatprep.subr.mxu0 0.0
    %310 = vmatpush1.msra.mxu0 0.0
    %311 = vmatprep.subr.mxu0 0.0
    %312 = vmatpush1.msra.mxu0 0.0
    %313 = vmatprep.subr.mxu0 0.0
    %314 = vmatpush1.msra.mxu0 0.0
    %315 = vmatprep.subr.mxu0 0.0
    %316 = vmatpush1.msra.mxu0 0.0
    %317 = vmatprep.subr.mxu0 0.0
    %318 = vmatpush1.msra.mxu0 0.0
    %319 = vmatprep.mubr.f32.mxu0 0.0
    %320 = vmatmul.mubr.f32.gmra.mrb[0].mxu0 %v253
    %v321 = vpop.f32.mrb[0].mxu0
    %v322 = vadd.f32 %v251, %v321
    %v323 = vpop.f32.mrb[0].mxu0
    %324 = vdwg.mxu0
    %v325 = vmax.f32 %v322, 0.0
    %v326 = vsel %vm165, %v325, 0.0
    %327 = vadd.xlane.f32.xlu0 %v326
    %v328 = vpop.xlane.xlu0 %327
    %v329 = vmul.f32 %v328, 0.0625
    %v330 = vsub.f32 %v325, %v329
    %v331 = vmul.f32 %v330, %v65
    %v332 = vmul.f32 %v331, %v331
    %v333 = vsel %vm165, %v332, 0.0
    %334 = vadd.xlane.f32.xlu0 %v333
    %v335 = vpop.xlane.xlu0 %334
    %v336 = vmul.f32 %v335, 0.0625
    %v337 = vadd.f32 %v336, 1e-05
    %v338 = vrsqrt.pop %v337
    %v339 = vmul.f32 %v331, %v338
    %v340 = vlaneseq
    %v341 = vshrl.u32 %v340, 7
    %v342 = vsub.s32 3, %v341
    %v343 = vrot.slane %v55, %v342
    %v344 = vmul.f32 %v339, %v343
    %v345 = vlaneseq
    %v346 = vshrl.u32 %v345, 7
    %v347 = vsub.s32 4, %v346
    %v348 = vrot.slane %v55, %v347
    %v349 = vadd.f32 %v344, %v348
    %s350 = scalar_lea.vmem [#allocation5], 192
    %v351 = vld [vmem:[%s350] sm:$0xff]
    %v352 = vld [vmem:[%s350 + $0x8] sm:$0xff]
    %v353 = vld [vmem:[%s350 + $0x10] sm:$0xff]
    %v354 = vld [vmem:[%s350 + $0x18] sm:$0xff]
    %v355 = vld [vmem:[%s350 + $0x20] sm:$0xff]
    %v356 = vld [vmem:[%s350 + $0x28] sm:$0xff]
    %v357 = vld [vmem:[%s350 + $0x30] sm:$0xff]
    %v358 = vld [vmem:[%s350 + $0x38] sm:$0xff]
    %v359 = vlaneseq
    %v360 = vshrl.u32 %v359, 7
    %v361 = vsub.s32 5, %v360
    %v362 = vrot.slane %v55, %v361
    %v364 = vsel %vm165, %v349, 0
    %366 = vmatprep.subr.mxu0 0.0
    %367 = vmatpush1.msra.mxu0 %v351
    %368 = vmatprep.subr.mxu0 0.0
    %369 = vmatpush1.msra.mxu0 %v352
    %370 = vmatprep.subr.mxu0 0.0
    %371 = vmatpush1.msra.mxu0 %v353
    %372 = vmatprep.subr.mxu0 0.0
    %373 = vmatpush1.msra.mxu0 %v354
    %374 = vmatprep.subr.mxu0 0.0
    %375 = vmatpush1.msra.mxu0 %v355
    %376 = vmatprep.subr.mxu0 0.0
    %377 = vmatpush1.msra.mxu0 %v356
    %378 = vmatprep.subr.mxu0 0.0
    %379 = vmatpush1.msra.mxu0 %v357
    %380 = vmatprep.subr.mxu0 0.0
    %381 = vmatpush1.msra.mxu0 %v358
    %382 = vmatprep.subr.mxu0 0.0
    %383 = vmatpush1.msra.mxu0 0.0
    %384 = vmatprep.subr.mxu0 0.0
    %385 = vmatpush1.msra.mxu0 0.0
    %386 = vmatprep.subr.mxu0 0.0
    %387 = vmatpush1.msra.mxu0 0.0
    %388 = vmatprep.subr.mxu0 0.0
    %389 = vmatpush1.msra.mxu0 0.0
    %390 = vmatprep.subr.mxu0 0.0
    %391 = vmatpush1.msra.mxu0 0.0
    %392 = vmatprep.subr.mxu0 0.0
    %393 = vmatpush1.msra.mxu0 0.0
    %394 = vmatprep.subr.mxu0 0.0
    %395 = vmatpush1.msra.mxu0 0.0
    %396 = vmatprep.subr.mxu0 0.0
    %397 = vmatpush1.msra.mxu0 0.0
    %398 = vmatprep.subr.mxu0 0.0
    %399 = vmatpush1.msra.mxu0 0.0
    %400 = vmatprep.subr.mxu0 0.0
    %401 = vmatpush1.msra.mxu0 0.0
    %402 = vmatprep.subr.mxu0 0.0
    %403 = vmatpush1.msra.mxu0 0.0
    %404 = vmatprep.subr.mxu0 0.0
    %405 = vmatpush1.msra.mxu0 0.0
    %406 = vmatprep.subr.mxu0 0.0
    %407 = vmatpush1.msra.mxu0 0.0
    %408 = vmatprep.subr.mxu0 0.0
    %409 = vmatpush1.msra.mxu0 0.0
    %410 = vmatprep.subr.mxu0 0.0
    %411 = vmatpush1.msra.mxu0 0.0
    %412 = vmatprep.subr.mxu0 0.0
    %413 = vmatpush1.msra.mxu0 0.0
    %414 = vmatprep.subr.mxu0 0.0
    %415 = vmatpush1.msra.mxu0 0.0
    %416 = vmatprep.subr.mxu0 0.0
    %417 = vmatpush1.msra.mxu0 0.0
    %418 = vmatprep.subr.mxu0 0.0
    %419 = vmatpush1.msra.mxu0 0.0
    %420 = vmatprep.subr.mxu0 0.0
    %421 = vmatpush1.msra.mxu0 0.0
    %422 = vmatprep.subr.mxu0 0.0
    %423 = vmatpush1.msra.mxu0 0.0
    %424 = vmatprep.subr.mxu0 0.0
    %425 = vmatpush1.msra.mxu0 0.0
    %426 = vmatprep.subr.mxu0 0.0
    %427 = vmatpush1.msra.mxu0 0.0
    %428 = vmatprep.subr.mxu0 0.0
    %429 = vmatpush1.msra.mxu0 0.0
    %430 = vmatprep.mubr.f32.mxu0 0.0
    %431 = vmatmul.mubr.f32.gmra.mrb[0].mxu0 %v364
    %v432 = vpop.f32.mrb[0].mxu0
    %v433 = vadd.f32 %v362, %v432
    %v434 = vpop.f32.mrb[0].mxu0
    %435 = vdwg.mxu0
    %v436 = vsel %vm165, %v433, 0.0
    %437 = vadd.xlane.f32.xlu0 %v436
    %v438 = vpop.xlane.xlu0 %437
    %v439 = vmul.f32 %v438, 0.03125
    %v440 = vsub.f32 %v433, %v439
    %v441 = vmul.f32 %v440, %v68
    %v442 = vmul.f32 %v441, %v441
    %v443 = vsel %vm165, %v442, 0.0
    %444 = vadd.xlane.f32.xlu0 %v443
    %v445 = vpop.xlane.xlu0 %444
    %v446 = vmul.f32 %v445, 0.03125
    %v447 = vadd.f32 %v446, 1e-05
    %v448 = vrsqrt.pop %v447
    %v449 = vmul.f32 %v441, %v448
    %v450 = vlaneseq
    %v451 = vshrl.u32 %v450, 7
    %v452 = vsub.s32 6, %v451
    %v453 = vrot.slane %v55, %v452
    %v454 = vmul.f32 %v449, %v453
    %v455 = vlaneseq
    %v456 = vshrl.u32 %v455, 7
    %v457 = vsub.s32 7, %v456
    %v458 = vrot.slane %v55, %v457
    %v459 = vadd.f32 %v454, %v458
    %v460 = vadd.f32 %v236, %v459
    %s461 = scalar_lea.vmem [#allocation5], 256
    %v462 = vld [vmem:[%s461] sm:$0xff]
    %v463 = vld [vmem:[%s461 + $0x8] sm:$0xff]
    %v464 = vld [vmem:[%s461 + $0x10] sm:$0xff]
    %v465 = vld [vmem:[%s461 + $0x18] sm:$0xff]
    %v466 = vld [vmem:[%s461 + $0x20] sm:$0xff]
    %v467 = vld [vmem:[%s461 + $0x28] sm:$0xff]
    %v468 = vld [vmem:[%s461 + $0x30] sm:$0xff]
    %v469 = vld [vmem:[%s461 + $0x38] sm:$0xff]
    %v470 = vlaneseq
    %v471 = vshrl.u32 %v470, 7
    %v472 = vsub.s32 0, %v471
    %v473 = vrot.slane %v56, %v472
    %v475 = vsel %vm165, %v460, 0
    %477 = vmatprep.subr.mxu0 0.0
    %478 = vmatpush1.msra.mxu0 %v462
    %479 = vmatprep.subr.mxu0 0.0
    %480 = vmatpush1.msra.mxu0 %v463
    %481 = vmatprep.subr.mxu0 0.0
    %482 = vmatpush1.msra.mxu0 %v464
    %483 = vmatprep.subr.mxu0 0.0
    %484 = vmatpush1.msra.mxu0 %v465
    %485 = vmatprep.subr.mxu0 0.0
    %486 = vmatpush1.msra.mxu0 %v466
    %487 = vmatprep.subr.mxu0 0.0
    %488 = vmatpush1.msra.mxu0 %v467
    %489 = vmatprep.subr.mxu0 0.0
    %490 = vmatpush1.msra.mxu0 %v468
    %491 = vmatprep.subr.mxu0 0.0
    %492 = vmatpush1.msra.mxu0 %v469
    %493 = vmatprep.subr.mxu0 0.0
    %494 = vmatpush1.msra.mxu0 0.0
    %495 = vmatprep.subr.mxu0 0.0
    %496 = vmatpush1.msra.mxu0 0.0
    %497 = vmatprep.subr.mxu0 0.0
    %498 = vmatpush1.msra.mxu0 0.0
    %499 = vmatprep.subr.mxu0 0.0
    %500 = vmatpush1.msra.mxu0 0.0
    %501 = vmatprep.subr.mxu0 0.0
    %502 = vmatpush1.msra.mxu0 0.0
    %503 = vmatprep.subr.mxu0 0.0
    %504 = vmatpush1.msra.mxu0 0.0
    %505 = vmatprep.subr.mxu0 0.0
    %506 = vmatpush1.msra.mxu0 0.0
    %507 = vmatprep.subr.mxu0 0.0
    %508 = vmatpush1.msra.mxu0 0.0
    %509 = vmatprep.subr.mxu0 0.0
    %510 = vmatpush1.msra.mxu0 0.0
    %511 = vmatprep.subr.mxu0 0.0
    %512 = vmatpush1.msra.mxu0 0.0
    %513 = vmatprep.subr.mxu0 0.0
    %514 = vmatpush1.msra.mxu0 0.0
    %515 = vmatprep.subr.mxu0 0.0
    %516 = vmatpush1.msra.mxu0 0.0
    %517 = vmatprep.subr.mxu0 0.0
    %518 = vmatpush1.msra.mxu0 0.0
    %519 = vmatprep.subr.mxu0 0.0
    %520 = vmatpush1.msra.mxu0 0.0
    %521 = vmatprep.subr.mxu0 0.0
    %522 = vmatpush1.msra.mxu0 0.0
    %523 = vmatprep.subr.mxu0 0.0
    %524 = vmatpush1.msra.mxu0 0.0
    %525 = vmatprep.subr.mxu0 0.0
    %526 = vmatpush1.msra.mxu0 0.0
    %527 = vmatprep.subr.mxu0 0.0
    %528 = vmatpush1.msra.mxu0 0.0
    %529 = vmatprep.subr.mxu0 0.0
    %530 = vmatpush1.msra.mxu0 0.0
    %531 = vmatprep.subr.mxu0 0.0
    %532 = vmatpush1.msra.mxu0 0.0
    %533 = vmatprep.subr.mxu0 0.0
    %534 = vmatpush1.msra.mxu0 0.0
    %535 = vmatprep.subr.mxu0 0.0
    %536 = vmatpush1.msra.mxu0 0.0
    %537 = vmatprep.subr.mxu0 0.0
    %538 = vmatpush1.msra.mxu0 0.0
    %539 = vmatprep.subr.mxu0 0.0
    %540 = vmatpush1.msra.mxu0 0.0
    %541 = vmatprep.mubr.f32.mxu0 0.0
    %542 = vmatmul.mubr.f32.gmra.mrb[0].mxu0 %v475
    %v543 = vpop.f32.mrb[0].mxu0
    %v544 = vadd.f32 %v473, %v543
    %v545 = vpop.f32.mrb[0].mxu0
    %546 = vdwg.mxu0
    %v547 = vmax.f32 %v544, 0.0
    %v548 = vlaneseq
    %v549 = vshrl.u32 %v548, 7
    %v550 = vsub.s32 1, %v549
    %v551 = vrot.slane %v56, %v550
    %v552 = vmul.f32 %v547, %v551
    %v553 = vsel %vm165, %v552, 0.0
    %554 = vadd.xlane.f32.xlu0 %v553
    %v555 = vpop.xlane.xlu0 %554
    %v556 = vlaneseq
    %v557 = vshrl.u32 %v556, 7
    %v558 = vsub.s32 2, %v557
    %v559 = vrot.slane %v60, %v558
    %v560 = vadd.f32 %v555, %v559
    %v561 = vmax.f32 %v560, 0.0
    %v562 = vand.u32 2147483647, %v560
    %v563 = vsub.f32 0.0, %v562
    %v564 = vmul.f32 %v563, 1.442695
    %v565 = vpow.pop %v564
    %v566 = vadd.f32 %v565, 1.0
    %v567 = vlog2.pop %v566
    %v568 = vmul.f32 %v567, 0.6931472
    %v569 = vmul.f32 -0.5, %v565
    %v570 = vadd.f32 %v569, 1.0
    %v571 = vmul.f32 %v570, %v565
    %v572 = vand.u32 2147483647, %v565
    %vm573 = vcmp.lt.f32.partialorder %v572, 0.0004427343
    %v574 = vsel %vm573, %v571, %v568
    %v575 = vadd.f32 %v561, %v574
    %v576 = vsub.f32 %v575, %v560
    %vm577 = vcmask 7168
    %v578 = vsel %vm577, %v576, 0.0
    %579 = vadd.xlane.f32.xlu0 %v578
    %v580 = vpop.xlane.xlu0 %579
    %v581 = vrot.slane %v580, 4
    %v582 = vadd.f32 %v580, %v581
    %v583 = vrot.slane %v582, 2
    %v584 = vadd.f32 %v582, %v583
    %v585 = vrot.slane %v584, 1
    %v586 = vadd.f32 %v584, %v585
    %s587 = vtos %v586
    %v588 = vrcp.pop 8.0
    %s589 = vtos %v588
    %s590 = smul.f32 %s587, %s589
    %591 = vst [vmem:[#allocation8] sm:$0xff] %v560
    %v592 = vstv %s590
    %593 = vst [vmem:[#allocation8 + $0x8] sm:$0xff] %v592
    // Predicated region
    $region26: #{tpu_custom_call.1} parent=1 // pred_check
      _
    $region27: #{tpu_custom_call.1} parent=1 // pred_check_branch
      %595 = sbr.rel (0) target = $region29
    $region28: #{tpu_custom_call.1} parent=1 // pred_region
      %s597 = ssub.s32 256, 256
      %598 = vsyncadd [#allocation4], %s597
      %s599 = sshll.u32 [#allocation8], 4
      %s600 = int_to_ptr.vmem [resolvable:$true] %s599
      %605 = dma.vmem_to_hbm [thread:$0]  %s600, 256, %s3, [#allocation4], 128, 128, 8
    $region29: #{tpu_custom_call.1} parent=1 // pred_fallthru
      _
    // Predicated region
    $region30: #{tpu_custom_call.1} parent=1 // pred_check
      _
    $region31: #{tpu_custom_call.1} parent=1 // pred_check_branch
      %607 = sbr.rel (0) target = $region33
    $region32: #{tpu_custom_call.1} parent=1 // pred_region
      %608 = dma.done [#allocation4], 256
    $region33: #{tpu_custom_call.1} parent=1 // pred_fallthru
      _
    %609 = vsyncpa [#allocation3], 1
    %610 = vsyncpa [#allocation6], 1
    %611 = vsyncpa [#allocation4], 1

</llo_original>
